<compile_context>
chip_gen: v5e
topology: v5e:2x2
jax: 0.10.0
libtpu: 0.0.40
codegen_flags: <defaults>
</compile_context>

<pallas_src>
import jax
import jax.numpy as jnp
from jax.experimental import pallas as pl
from jax.experimental.pallas import tpu as pltpu


# ----------------------------- small helpers --------------------------------

def _round_up(x, m):
    return (x + m - 1) // m * m


def _device_kind():
    try:
        return jax.devices()[0].device_kind.lower()
    except Exception:
        return ""


def _vmem_budget_bytes(device_kind):
    """Per-TensorCore VMEM budget with ~20% headroom for compiler scratch."""
    cap = None
    try:
        cap = getattr(pltpu.get_tpu_info(), "vmem_capacity_bytes", None)
    except Exception:
        cap = None
    if not cap:
        # v7x has 64 MiB per TensorCore; v5e/v6e have 128 MiB.
        cap = (64 if "7" in device_kind else 128) * 1024 * 1024
    return int(cap * 0.8)


def _prev_divisor(n, start):
    """Largest divisor of n that is <= start (>= 1)."""
    d = max(1, min(n, start))
    while n % d != 0:
        d -= 1
    return d


def _pick_tile(total, target, align):
    """Largest divisor of `total` <= target that is a multiple of `align`
    (or the full extent itself -- allowed by the (8,128) block rule)."""
    for d in range(min(total, target), 0, -1):
        if total % d == 0 and (d % align == 0 or d == total):
            return d
    return total


def _shrink_tile(total, tile):
    """Next smaller divisor of `total` below `tile` that stays 8-aligned."""
    for d in range(tile - 1, 7, -1):
        if total % d == 0 and d % 8 == 0:
            return d
    return None


# --------------------------------- kernel -----------------------------------

def _make_kernel(batch_tile, q_tile, e_pad, kv_tile, num_kv, compute_dtype,
                 approx_recip):
    def kernel(xq_ref, xkv_ref, wq_ref, wk_ref, wv_ref, bq_ref, bk_ref, bv_ref,
               o_ref, q_sc, m_sc, l_sc, acc_sc):
        kv = pl.program_id(2)

        @pl.when(kv == 0)
        def _init():
            # Query projection once per (batch, query) tile: (Bt*Tq, Ep)@(Ep, Ep).
            xq = xq_ref[...].reshape(batch_tile * q_tile, e_pad)
            q = jnp.dot(xq, wq_ref[...], preferred_element_type=jnp.float32)
            q = q + bq_ref[...]                      # bias in f32
            q_sc[...] = q.reshape(batch_tile, q_tile, e_pad).astype(compute_dtype)
            m_sc[...] = jnp.full(m_sc.shape, -jnp.inf, dtype=m_sc.dtype)
            l_sc[...] = jnp.zeros(l_sc.shape, dtype=l_sc.dtype)
            acc_sc[...] = jnp.zeros(acc_sc.shape, dtype=acc_sc.dtype)

        # K / V projections for this KV tile only.
        xkv = xkv_ref[...].reshape(batch_tile * kv_tile, e_pad)
        k = jnp.dot(xkv, wk_ref[...], preferred_element_type=jnp.float32) + bk_ref[...]
        v = jnp.dot(xkv, wv_ref[...], preferred_element_type=jnp.float32) + bv_ref[...]
        k = k.reshape(batch_tile, kv_tile, e_pad).astype(compute_dtype)
        v = v.reshape(batch_tile, kv_tile, e_pad).astype(compute_dtype)

        # Scores for this KV tile (no 1/sqrt(d) scaling, matching the module).
        s = jnp.einsum("bqd,bkd->bqk", q_sc[...], k,
                       preferred_element_type=jnp.float32)

        # Online (flash-style) softmax update, all in f32.
        m_prev = m_sc[...]
        m_new = jnp.maximum(m_prev, jnp.max(s, axis=-1, keepdims=True))
        alpha = jnp.exp(m_prev - m_new)
        p = jnp.exp(s - m_new)
        l_sc[...] = alpha * l_sc[...] + jnp.sum(p, axis=-1, keepdims=True)
        acc_sc[...] = alpha * acc_sc[...] + jnp.einsum(
            "bqk,bkd->bqd", p.astype(compute_dtype), v,
            preferred_element_type=jnp.float32)
        m_sc[...] = m_new

        @pl.when(kv == num_kv - 1)
        def _finalize():
            inv_l = pl.reciprocal(l_sc[...], approx=approx_recip)
            o_ref[...] = (acc_sc[...] * inv_l).astype(o_ref.dtype)

    return kernel


# -------------------------------- wrapper ------------------------------------

def self_attention(x, wq, wk, wv, bq, bk, bv, *, batch_tile=None, q_tile=None,
                   kv_tile=None, compute_dtype=jnp.bfloat16):
    """x: (B, S, E). wq/wk/wv: (E, E) in nn.Linear (out, in) layout. b*: (E,)."""
    B, S, E = x.shape
    out_dtype = x.dtype
    Ep = _round_up(E, 128)                       # lane-dense embed dim

    kind = _device_kind()
    multi_core = "7" in kind                     # v7x: 2 TensorCores / chip
    is_v5 = "v5" in kind                         # 4x128x128 MXU generation
    budget = _vmem_budget_bytes(kind)

    cbytes = jnp.dtype(compute_dtype).itemsize
    obytes = jnp.dtype(out_dtype).itemsize

    # --- tile heuristics ------------------------------------------------------
    # KV tile: prefer MXU-filling tiles that divide S; 128 only on v5e.
    if kv_tile is None:
        kv_tile = S
        for cand in ((512, 256, 128) if is_v5 else (512, 256)):
            if S > cand and S % cand == 0:
                kv_tile = cand
                break

    # Query tile: bounds scratch independent of S (target ~512 rows).
    if q_tile is None:
        q_tile = _pick_tile(S, 512, 8)

    # Batch tile: fill the MXU M dimension (target Bt*Tq >= 256), Bt | B.
    if batch_tile is None:
        want = max(1, -(-256 // q_tile))
        batch_tile = min(B, want)
        while B % batch_tile != 0:
            batch_tile -= 1
        # v7x megacore: make sure both TensorCores get parallel work.
        if multi_core and (B // batch_tile) * (S // q_tile) < 2 and B >= 2:
            batch_tile = _prev_divisor(B, batch_tile - 1)

    # Explicit VMEM footprint check; shrink tiles until the budget fits.
    def footprint(bt, tq, tk):
        fixed = 3 * Ep * Ep * cbytes + 3 * Ep * 4      # single-buffered weights+biases
        step = (2 * bt * tq * Ep * cbytes              # xq block  (double-buffered)
                + 2 * bt * tk * Ep * cbytes            # xkv block (double-buffered)
                + 2 * bt * tq * Ep * obytes            # out block (double-buffered)
                + bt * tq * Ep * cbytes                # q scratch
                + bt * tq * Ep * 4                     # acc scratch (f32)
                + 2 * bt * tq * 4)                     # m / l scratch
        return fixed + step

    while footprint(batch_tile, q_tile, kv_tile) > budget:
        if batch_tile > 1:
            batch_tile = _prev_divisor(B, batch_tile - 1)
        elif (nq := _shrink_tile(S, q_tile)) is not None:
            q_tile = nq
        elif (nk := _shrink_tile(S, kv_tile)) is not None:
            kv_tile = nk
        else:
            # TODO(synk): resident weights alone exceed the budget at this Ep;
            # needs the weight-streaming (K grid axis) path.
            break

    num_kv = S // kv_tile

    # Pre-transpose weights to (in, out) so the kernel does x @ W, zero-pad the
    # embed dims to Ep, and cast the MXU operands to the compute dtype.
    def prep_w(w):
        return jnp.pad(w.T, ((0, Ep - E), (0, Ep - E))).astype(compute_dtype)

    def prep_b(b):
        return jnp.pad(b, (0, Ep - E)).reshape(1, Ep).astype(jnp.float32)

    xp = jnp.pad(x, ((0, 0), (0, 0), (0, Ep - E))).astype(compute_dtype)

    kernel = _make_kernel(batch_tile, q_tile, Ep, kv_tile, num_kv, compute_dtype,
                          approx_recip=(compute_dtype != jnp.float32))

    # Invariant weights / biases: constant block index over the whole grid ->
    # single-buffered (no point double-buffering something that never changes).
    weight_spec = pl.BlockSpec((Ep, Ep), lambda b, q, k: (0, 0),
                               pipeline_mode=pl.Buffered(1))
    bias_spec = pl.BlockSpec((1, Ep), lambda b, q, k: (0, 0),
                             pipeline_mode=pl.Buffered(1))

    out_padded = pl.pallas_call(
        kernel,
        out_shape=jax.ShapeDtypeStruct((B, S, Ep), out_dtype),
        grid_spec=pltpu.PrefetchScalarGridSpec(
            num_scalar_prefetch=0,
            # reduction (kv) axis last; batch / query axes are parallel
            grid=(B // batch_tile, S // q_tile, num_kv),
            in_specs=[
                pl.BlockSpec((batch_tile, q_tile, Ep),
                             lambda b, q, k: (b, q, 0)),        # x for Q proj
                pl.BlockSpec((batch_tile, kv_tile, Ep),
                             lambda b, q, k: (b, k, 0)),        # x for K/V proj
                weight_spec, weight_spec, weight_spec,          # Wq^T, Wk^T, Wv^T
                bias_spec, bias_spec, bias_spec,                # bq, bk, bv
            ],
            out_specs=pl.BlockSpec((batch_tile, q_tile, Ep),
                                   lambda b, q, k: (b, q, 0)),
            scratch_shapes=[
                pltpu.VMEM((batch_tile, q_tile, Ep), compute_dtype),  # q
                pltpu.VMEM((batch_tile, q_tile, 1), jnp.float32),     # running max
                pltpu.VMEM((batch_tile, q_tile, 1), jnp.float32),     # running sum
                pltpu.VMEM((batch_tile, q_tile, Ep), jnp.float32),    # output acc
            ],
        ),
        compiler_params=pltpu.CompilerParams(
            dimension_semantics=("parallel", "parallel", "arbitrary"),
            vmem_limit_bytes=int(budget),
        ),
    )(xp, xp, prep_w(wq), prep_w(wk), prep_w(wv), prep_b(bq), prep_b(bk), prep_b(bv))

    return out_padded[:, :, :E]


def reference_self_attention(x, wq, wk, wv, bq, bk, bv):
    q = jnp.einsum("bse,oe->bso", x, wq) + bq
    k = jnp.einsum("bse,oe->bso", x, wk) + bk
    v = jnp.einsum("bse,oe->bso", x, wv) + bv
    scores = jnp.einsum("bqe,bke->bqk", q, k)
    attn = jax.nn.softmax(scores, axis=-1)
    return jnp.einsum("bqk,bke->bqe", attn, v)


if __name__ == "__main__":
    B, S, E = 2, 8, 32  # batch, seq, embed_dim

    key = jax.random.PRNGKey(0)
    kx, kq, kk, kv_, kbq, kbk, kbv = jax.random.split(key, 7)

    x = jax.random.normal(kx, (B, S, E), dtype=jnp.float32)

    # nn.Linear-style parameters (W: (out, in), b: (out,))
    scale = 1.0 / jnp.sqrt(jnp.float32(E))
    wq = jax.random.uniform(kq, (E, E), jnp.float32, -scale, scale)
    wk = jax.random.uniform(kk, (E, E), jnp.float32, -scale, scale)
    wv = jax.random.uniform(kv_, (E, E), jnp.float32, -scale, scale)
    bq = jax.random.uniform(kbq, (E,), jnp.float32, -scale, scale)
    bk = jax.random.uniform(kbk, (E,), jnp.float32, -scale, scale)
    bv = jax.random.uniform(kbv, (E,), jnp.float32, -scale, scale)

    ref = reference_self_attention(x, wq, wk, wv, bq, bk, bv)

    # Correctness check with f32 MXU operands + exact reciprocal.
    out_f32 = self_attention(x, wq, wk, wv, bq, bk, bv,
                             compute_dtype=jnp.float32)
    out_f32 = jax.block_until_ready(out_f32)
    assert jnp.allclose(out_f32, ref, atol=1e-2, rtol=1e-2), "f32 path mismatch"

    # Fast path: bf16 MXU operands, f32 accumulation and f32 softmax.
    out_bf16 = self_attention(x, wq, wk, wv, bq, bk, bv,
                              compute_dtype=jnp.bfloat16)
    out_bf16 = jax.block_until_ready(out_bf16)
    assert jnp.allclose(out_bf16, ref, atol=1e-1, rtol=1e-1), "bf16 path mismatch"

    print("KERNEL_OK")
</pallas_src>

<mosaic_0001>
module attributes {stable_mosaic.version = 11 : i64} {
  func.func @kernel(%arg0: i32, %arg1: i32, %arg2: i32, %arg3: memref<2x8x128xf32, #tpu.memory_space<vmem>>, %arg4: memref<2x8x128xf32, #tpu.memory_space<vmem>>, %arg5: memref<128x128xf32, #tpu.memory_space<vmem>>, %arg6: memref<128x128xf32, #tpu.memory_space<vmem>>, %arg7: memref<128x128xf32, #tpu.memory_space<vmem>>, %arg8: memref<1x128xf32, #tpu.memory_space<vmem>>, %arg9: memref<1x128xf32, #tpu.memory_space<vmem>>, %arg10: memref<1x128xf32, #tpu.memory_space<vmem>>, %arg11: memref<2x8x128xf32, #tpu.memory_space<vmem>>, %arg12: memref<2x8x128xf32, #tpu.memory_space<vmem>>, %arg13: memref<2x8x1xf32, #tpu.memory_space<vmem>>, %arg14: memref<2x8x1xf32, #tpu.memory_space<vmem>>, %arg15: memref<2x8x128xf32, #tpu.memory_space<vmem>>) attributes {dimension_semantics = [#tpu.dimension_semantics<parallel>, #tpu.dimension_semantics<parallel>, #tpu.dimension_semantics<arbitrary>], iteration_bounds = array<i64: 1, 1, 1>, scalar_prefetch = 0 : i64, scratch_operands = 4 : i64, tpu.core_type = #tpu.core_type<tc>, window_params = [{transform_indices = @transform_0, window_bounds = array<i64: 2, 8, 128>}, {transform_indices = @transform_1, window_bounds = array<i64: 2, 8, 128>}, {pipeline_mode = #tpu.pipeline_mode<synchronous>, transform_indices = @transform_2, window_bounds = array<i64: 128, 128>}, {pipeline_mode = #tpu.pipeline_mode<synchronous>, transform_indices = @transform_3, window_bounds = array<i64: 128, 128>}, {pipeline_mode = #tpu.pipeline_mode<synchronous>, transform_indices = @transform_4, window_bounds = array<i64: 128, 128>}, {pipeline_mode = #tpu.pipeline_mode<synchronous>, transform_indices = @transform_5, window_bounds = array<i64: 1, 128>}, {pipeline_mode = #tpu.pipeline_mode<synchronous>, transform_indices = @transform_6, window_bounds = array<i64: 1, 128>}, {pipeline_mode = #tpu.pipeline_mode<synchronous>, transform_indices = @transform_7, window_bounds = array<i64: 1, 128>}, {transform_indices = @transform_8, window_bounds = array<i64: 2, 8, 128>}]} {
    %c0_i32 = arith.constant 0 : i32
    %0 = arith.cmpi eq, %arg2, %c0_i32 : i32
    %1 = arith.extui %0 : i1 to i32
    %c0_i32_0 = arith.constant 0 : i32
    %2 = arith.cmpi ne, %1, %c0_i32_0 : i32
    scf.if %2 {
      %c0_39 = arith.constant 0 : index
      %c0_40 = arith.constant 0 : index
      %c0_41 = arith.constant 0 : index
      %44 = vector.load %arg3[%c0_39, %c0_40, %c0_41] : memref<2x8x128xf32, #tpu.memory_space<vmem>>, vector<2x8x128xf32>
      %45 = vector.shape_cast %44 : vector<2x8x128xf32> to vector<16x128xf32>
      %c0_42 = arith.constant 0 : index
      %c0_43 = arith.constant 0 : index
      %46 = vector.load %arg5[%c0_42, %c0_43] : memref<128x128xf32, #tpu.memory_space<vmem>>, vector<128x128xf32>
      %cst_44 = arith.constant dense<0.000000e+00> : vector<16x128xf32>
      %47 = tpu.matmul %45, %46, %cst_44 {dimension_numbers = #tpu.dot_dimension_numbers<[1], [0], [0], [1], [0, 0, 1, 1], [], []>} : vector<16x128xf32>, vector<128x128xf32>, vector<16x128xf32> -> vector<16x128xf32>
      %c0_45 = arith.constant 0 : index
      %c0_46 = arith.constant 0 : index
      %48 = vector.load %arg8[%c0_45, %c0_46] : memref<1x128xf32, #tpu.memory_space<vmem>>, vector<1x128xf32>
      %49 = vector.broadcast %48 : vector<1x128xf32> to vector<16x128xf32>
      %50 = arith.addf %47, %49 : vector<16x128xf32>
      %51 = vector.shape_cast %50 : vector<16x128xf32> to vector<2x8x128xf32>
      %c0_47 = arith.constant 0 : index
      %c0_48 = arith.constant 0 : index
      %c0_49 = arith.constant 0 : index
      %52 = vector.load %arg12[%c0_47, %c0_48, %c0_49] : memref<2x8x128xf32, #tpu.memory_space<vmem>>, vector<2x8x128xf32>
      tpu.vector_store %arg12[%c0_47, %c0_48, %c0_49], %51 {strides = array<i32>} : memref<2x8x128xf32, #tpu.memory_space<vmem>>, vector<2x8x128xf32>,
      %cst_50 = arith.constant 0xFF800000 : f32
      %53 = vector.broadcast %cst_50 : f32 to vector<2x8x1xf32>
      %c0_51 = arith.constant 0 : index
      %c0_52 = arith.constant 0 : index
      %c0_53 = arith.constant 0 : index
      %54 = vector.load %arg13[%c0_51, %c0_52, %c0_53] : memref<2x8x1xf32, #tpu.memory_space<vmem>>, vector<2x8x1xf32>
      tpu.vector_store %arg13[%c0_51, %c0_52, %c0_53], %53 {strides = array<i32>} : memref<2x8x1xf32, #tpu.memory_space<vmem>>, vector<2x8x1xf32>,
      %cst_54 = arith.constant 0.000000e+00 : f32
      %55 = vector.broadcast %cst_54 : f32 to vector<2x8x1xf32>
      %c0_55 = arith.constant 0 : index
      %c0_56 = arith.constant 0 : index
      %c0_57 = arith.constant 0 : index
      %56 = vector.load %arg14[%c0_55, %c0_56, %c0_57] : memref<2x8x1xf32, #tpu.memory_space<vmem>>, vector<2x8x1xf32>
      tpu.vector_store %arg14[%c0_55, %c0_56, %c0_57], %55 {strides = array<i32>} : memref<2x8x1xf32, #tpu.memory_space<vmem>>, vector<2x8x1xf32>,
      %cst_58 = arith.constant 0.000000e+00 : f32
      %57 = vector.broadcast %cst_58 : f32 to vector<2x8x128xf32>
      %c0_59 = arith.constant 0 : index
      %c0_60 = arith.constant 0 : index
      %c0_61 = arith.constant 0 : index
      %58 = vector.load %arg15[%c0_59, %c0_60, %c0_61] : memref<2x8x128xf32, #tpu.memory_space<vmem>>, vector<2x8x128xf32>
      tpu.vector_store %arg15[%c0_59, %c0_60, %c0_61], %57 {strides = array<i32>} : memref<2x8x128xf32, #tpu.memory_space<vmem>>, vector<2x8x128xf32>,
    } else {
    }
    %c0 = arith.constant 0 : index
    %c0_1 = arith.constant 0 : index
    %c0_2 = arith.constant 0 : index
    %3 = vector.load %arg4[%c0, %c0_1, %c0_2] : memref<2x8x128xf32, #tpu.memory_space<vmem>>, vector<2x8x128xf32>
    %4 = vector.shape_cast %3 : vector<2x8x128xf32> to vector<16x128xf32>
    %c0_3 = arith.constant 0 : index
    %c0_4 = arith.constant 0 : index
    %5 = vector.load %arg6[%c0_3, %c0_4] : memref<128x128xf32, #tpu.memory_space<vmem>>, vector<128x128xf32>
    %cst = arith.constant dense<0.000000e+00> : vector<16x128xf32>
    %6 = tpu.matmul %4, %5, %cst {dimension_numbers = #tpu.dot_dimension_numbers<[1], [0], [0], [1], [0, 0, 1, 1], [], []>} : vector<16x128xf32>, vector<128x128xf32>, vector<16x128xf32> -> vector<16x128xf32>
    %c0_5 = arith.constant 0 : index
    %c0_6 = arith.constant 0 : index
    %7 = vector.load %arg9[%c0_5, %c0_6] : memref<1x128xf32, #tpu.memory_space<vmem>>, vector<1x128xf32>
    %8 = vector.broadcast %7 : vector<1x128xf32> to vector<16x128xf32>
    %9 = arith.addf %6, %8 : vector<16x128xf32>
    %c0_7 = arith.constant 0 : index
    %c0_8 = arith.constant 0 : index
    %10 = vector.load %arg7[%c0_7, %c0_8] : memref<128x128xf32, #tpu.memory_space<vmem>>, vector<128x128xf32>
    %cst_9 = arith.constant dense<0.000000e+00> : vector<16x128xf32>
    %11 = tpu.matmul %4, %10, %cst_9 {dimension_numbers = #tpu.dot_dimension_numbers<[1], [0], [0], [1], [0, 0, 1, 1], [], []>} : vector<16x128xf32>, vector<128x128xf32>, vector<16x128xf32> -> vector<16x128xf32>
    %c0_10 = arith.constant 0 : index
    %c0_11 = arith.constant 0 : index
    %12 = vector.load %arg10[%c0_10, %c0_11] : memref<1x128xf32, #tpu.memory_space<vmem>>, vector<1x128xf32>
    %13 = vector.broadcast %12 : vector<1x128xf32> to vector<16x128xf32>
    %14 = arith.addf %11, %13 : vector<16x128xf32>
    %15 = vector.shape_cast %9 : vector<16x128xf32> to vector<2x8x128xf32>
    %16 = vector.shape_cast %14 : vector<16x128xf32> to vector<2x8x128xf32>
    %c0_12 = arith.constant 0 : index
    %c0_13 = arith.constant 0 : index
    %c0_14 = arith.constant 0 : index
    %17 = vector.load %arg12[%c0_12, %c0_13, %c0_14] : memref<2x8x128xf32, #tpu.memory_space<vmem>>, vector<2x8x128xf32>
    "tpu.trace_start"() <{level = 10 : i32, message = "bqd,bkd->bqk"}> : () -> ()
    %cst_15 = arith.constant dense<0.000000e+00> : vector<2x8x8xf32>
    %18 = tpu.matmul %17, %15, %cst_15 {dimension_numbers = #tpu.dot_dimension_numbers<[2], [2], [1], [1], [0, 0, 0, 1, 1, 1], [0], [0]>} : vector<2x8x128xf32>, vector<2x8x128xf32>, vector<2x8x8xf32> -> vector<2x8x8xf32>
    "tpu.trace_stop"() : () -> ()
    %c0_16 = arith.constant 0 : index
    %c0_17 = arith.constant 0 : index
    %c0_18 = arith.constant 0 : index
    %19 = vector.load %arg13[%c0_16, %c0_17, %c0_18] : memref<2x8x1xf32, #tpu.memory_space<vmem>>, vector<2x8x1xf32>
    %cst_19 = arith.constant dense<0xFF800000> : vector<2x8xf32>
    %20 = vector.multi_reduction <maximumf>, %18, %cst_19 [2] : vector<2x8x8xf32> to vector<2x8xf32>
    %21 = vector.shape_cast %20 : vector<2x8xf32> to vector<2x8x1xf32>
    %22 = arith.maximumf %19, %21 : vector<2x8x1xf32>
    %23 = arith.subf %19, %22 : vector<2x8x1xf32>
    %24 = math.exp %23 : vector<2x8x1xf32>
    %25 = vector.broadcast %22 : vector<2x8x1xf32> to vector<2x8x8xf32>
    %26 = arith.subf %18, %25 : vector<2x8x8xf32>
    %27 = math.exp %26 : vector<2x8x8xf32>
    %c0_20 = arith.constant 0 : index
    %c0_21 = arith.constant 0 : index
    %c0_22 = arith.constant 0 : index
    %28 = vector.load %arg14[%c0_20, %c0_21, %c0_22] : memref<2x8x1xf32, #tpu.memory_space<vmem>>, vector<2x8x1xf32>
    %29 = arith.mulf %24, %28 : vector<2x8x1xf32>
    %cst_23 = arith.constant dense<0.000000e+00> : vector<2x8xf32>
    %30 = vector.multi_reduction <add>, %27, %cst_23 [2] : vector<2x8x8xf32> to vector<2x8xf32>
    %31 = vector.shape_cast %30 : vector<2x8xf32> to vector<2x8x1xf32>
    %32 = arith.addf %29, %31 : vector<2x8x1xf32>
    %c0_24 = arith.constant 0 : index
    %c0_25 = arith.constant 0 : index
    %c0_26 = arith.constant 0 : index
    %33 = vector.load %arg14[%c0_24, %c0_25, %c0_26] : memref<2x8x1xf32, #tpu.memory_space<vmem>>, vector<2x8x1xf32>
    tpu.vector_store %arg14[%c0_24, %c0_25, %c0_26], %32 {strides = array<i32>} : memref<2x8x1xf32, #tpu.memory_space<vmem>>, vector<2x8x1xf32>,
    %c0_27 = arith.constant 0 : index
    %c0_28 = arith.constant 0 : index
    %c0_29 = arith.constant 0 : index
    %34 = vector.load %arg15[%c0_27, %c0_28, %c0_29] : memref<2x8x128xf32, #tpu.memory_space<vmem>>, vector<2x8x128xf32>
    %35 = vector.broadcast %24 : vector<2x8x1xf32> to vector<2x8x128xf32>
    %36 = arith.mulf %35, %34 : vector<2x8x128xf32>
    "tpu.trace_start"() <{level = 10 : i32, message = "bqk,bkd->bqd"}> : () -> ()
    %cst_30 = arith.constant dense<0.000000e+00> : vector<2x8x128xf32>
    %37 = tpu.matmul %27, %16, %cst_30 {dimension_numbers = #tpu.dot_dimension_numbers<[2], [1], [1], [2], [0, 0, 0, 1, 1, 2], [0], [0]>} : vector<2x8x8xf32>, vector<2x8x128xf32>, vector<2x8x128xf32> -> vector<2x8x128xf32>
    "tpu.trace_stop"() : () -> ()
    %38 = arith.addf %36, %37 : vector<2x8x128xf32>
    %c0_31 = arith.constant 0 : index
    %c0_32 = arith.constant 0 : index
    %c0_33 = arith.constant 0 : index
    %39 = vector.load %arg15[%c0_31, %c0_32, %c0_33] : memref<2x8x128xf32, #tpu.memory_space<vmem>>, vector<2x8x128xf32>
    tpu.vector_store %arg15[%c0_31, %c0_32, %c0_33], %38 {strides = array<i32>} : memref<2x8x128xf32, #tpu.memory_space<vmem>>, vector<2x8x128xf32>,
    %c0_34 = arith.constant 0 : index
    %c0_35 = arith.constant 0 : index
    %c0_36 = arith.constant 0 : index
    %40 = vector.load %arg13[%c0_34, %c0_35, %c0_36] : memref<2x8x1xf32, #tpu.memory_space<vmem>>, vector<2x8x1xf32>
    tpu.vector_store %arg13[%c0_34, %c0_35, %c0_36], %22 {strides = array<i32>} : memref<2x8x1xf32, #tpu.memory_space<vmem>>, vector<2x8x1xf32>,
    %c0_i32_37 = arith.constant 0 : i32
    %41 = arith.cmpi eq, %arg2, %c0_i32_37 : i32
    %42 = arith.extui %41 : i1 to i32
    %c0_i32_38 = arith.constant 0 : i32
    %43 = arith.cmpi ne, %42, %c0_i32_38 : i32
    scf.if %43 {
      %c0_39 = arith.constant 0 : index
      %c0_40 = arith.constant 0 : index
      %c0_41 = arith.constant 0 : index
      %44 = vector.load %arg14[%c0_39, %c0_40, %c0_41] : memref<2x8x1xf32, #tpu.memory_space<vmem>>, vector<2x8x1xf32>
      %45 = tpu.reciprocal %44 : vector<2x8x1xf32> -> vector<2x8x1xf32>
      %c0_42 = arith.constant 0 : index
      %c0_43 = arith.constant 0 : index
      %c0_44 = arith.constant 0 : index
      %46 = vector.load %arg15[%c0_42, %c0_43, %c0_44] : memref<2x8x128xf32, #tpu.memory_space<vmem>>, vector<2x8x128xf32>
      %47 = vector.broadcast %45 : vector<2x8x1xf32> to vector<2x8x128xf32>
      %48 = arith.mulf %46, %47 : vector<2x8x128xf32>
      %c0_45 = arith.constant 0 : index
      %c0_46 = arith.constant 0 : index
      %c0_47 = arith.constant 0 : index
      %49 = vector.load %arg11[%c0_45, %c0_46, %c0_47] : memref<2x8x128xf32, #tpu.memory_space<vmem>>, vector<2x8x128xf32>
      tpu.vector_store %arg11[%c0_45, %c0_46, %c0_47], %48 {strides = array<i32>} : memref<2x8x128xf32, #tpu.memory_space<vmem>>, vector<2x8x128xf32>,
    } else {
    }
    return
  }
  func.func @transform_0(%arg0: i32, %arg1: i32, %arg2: i32) -> (i32, i32, i32) {
    %c0_i32 = arith.constant 0 : i32
    %c0_i32_0 = arith.constant 0 : i32
    return %arg0, %arg1, %c0_i32 : i32, i32, i32
  }
  func.func @transform_1(%arg0: i32, %arg1: i32, %arg2: i32) -> (i32, i32, i32) {
    %c0_i32 = arith.constant 0 : i32
    %c0_i32_0 = arith.constant 0 : i32
    return %arg0, %arg2, %c0_i32 : i32, i32, i32
  }
  func.func @transform_2(%arg0: i32, %arg1: i32, %arg2: i32) -> (i32, i32) {
    %c0_i32 = arith.constant 0 : i32
    %c0_i32_0 = arith.constant 0 : i32
    %c0_i32_1 = arith.constant 0 : i32
    return %c0_i32, %c0_i32_0 : i32, i32
  }
  func.func @transform_3(%arg0: i32, %arg1: i32, %arg2: i32) -> (i32, i32) {
    %c0_i32 = arith.constant 0 : i32
    %c0_i32_0 = arith.constant 0 : i32
    %c0_i32_1 = arith.constant 0 : i32
    return %c0_i32, %c0_i32_0 : i32, i32
  }
  func.func @transform_4(%arg0: i32, %arg1: i32, %arg2: i32) -> (i32, i32) {
    %c0_i32 = arith.constant 0 : i32
    %c0_i32_0 = arith.constant 0 : i32
    %c0_i32_1 = arith.constant 0 : i32
    return %c0_i32, %c0_i32_0 : i32, i32
  }
  func.func @transform_5(%arg0: i32, %arg1: i32, %arg2: i32) -> (i32, i32) {
    %c0_i32 = arith.constant 0 : i32
    %c0_i32_0 = arith.constant 0 : i32
    %c0_i32_1 = arith.constant 0 : i32
    return %c0_i32, %c0_i32_0 : i32, i32
  }
  func.func @transform_6(%arg0: i32, %arg1: i32, %arg2: i32) -> (i32, i32) {
    %c0_i32 = arith.constant 0 : i32
    %c0_i32_0 = arith.constant 0 : i32
    %c0_i32_1 = arith.constant 0 : i32
    return %c0_i32, %c0_i32_0 : i32, i32
  }
  func.func @transform_7(%arg0: i32, %arg1: i32, %arg2: i32) -> (i32, i32) {
    %c0_i32 = arith.constant 0 : i32
    %c0_i32_0 = arith.constant 0 : i32
    %c0_i32_1 = arith.constant 0 : i32
    return %c0_i32, %c0_i32_0 : i32, i32
  }
  func.func @transform_8(%arg0: i32, %arg1: i32, %arg2: i32) -> (i32, i32, i32) {
    %c0_i32 = arith.constant 0 : i32
    %c0_i32_0 = arith.constant 0 : i32
    return %arg0, %arg1, %c0_i32 : i32, i32, i32
  }
}

</mosaic_0001>

<llo_original>
// kernel: tpu_custom_call.1
$region0: #{tpu_custom_call.1}
  #allocation0 [shape = 'u32[]', space=smem, size = 0x4, offset = 0x4, fixed_abs, tag = 'smem constant byte address 0x4 - core index']
  #allocation1 [shape = 'u32[72,128]{1,0:T(1,128)}', space=vmem, size = 0x9000, scoped, tag = 'internal scratch']
  #allocation2 [shape = 'f32[2,8,128]{2,1,0:T(8,128)}', space=vmem, size = 0x2000, scoped, tag = 'scratch operand']
  #allocation3 [shape = 'f32[2,8,1]{2,1,0:T(8,128)}', space=vmem, size = 0x2000, scoped, tag = 'scratch operand']
  #allocation4 [shape = 'f32[2,8,1]{2,1,0:T(8,128)}', space=vmem, size = 0x2000, scoped, tag = 'scratch operand']
  #allocation5 [shape = 'f32[2,8,128]{2,1,0:T(8,128)}', space=vmem, size = 0x2000, scoped, tag = 'scratch operand']
  %s0 = inlined_call_operand.hbm [shape: f32[2,8,128], index: 0, kind: input, shape index: {}]
  %s1 = inlined_call_operand.hbm [shape: f32[2,8,128], index: 1, kind: input, shape index: {}]
  %s2 = inlined_call_operand.hbm [shape: f32[128,128], index: 2, kind: input, shape index: {}]
  %s3 = inlined_call_operand.hbm [shape: f32[128,128], index: 3, kind: input, shape index: {}]
  %s4 = inlined_call_operand.hbm [shape: f32[128,128], index: 4, kind: input, shape index: {}]
  %s5 = inlined_call_operand.vmem [shape: f32[1,128], index: 5, kind: input, shape index: {}]
  %s6 = inlined_call_operand.vmem [shape: f32[1,128], index: 6, kind: input, shape index: {}]
  %s7 = inlined_call_operand.vmem [shape: f32[1,128], index: 7, kind: input, shape index: {}]
  %s8 = inlined_call_operand.hbm [shape: f32[2,8,128], index: 8, kind: output, shape index: {}]
  %s9 = sld [smem:[#allocation0]]
  $region70: #{tpu_custom_call.1} parent=0
    _
  %s11 = ssub.s32 1, %s9
  %s12 = scalar_select 0, %s11, %s9
  $region1: #{tpu_custom_call.1} parent=0
    #allocation6 [shape = 'u8[8192]{0}', space=vmem, size = 0x2000, scoped, tag = 'input window, operand 0, single buffered']
    #allocation7 [shape = 's32[1]{0}', space=sflag, size = 0x4, scoped, tag = 'scoped memory for tpu_custom_call.1']
    #allocation8 [shape = 's32[1]{0}', space=sflag, size = 0x4, scoped, tag = 'scoped memory for tpu_custom_call.1']
    #allocation9 [shape = 'u8[8192]{0}', space=vmem, size = 0x2000, scoped, tag = 'input window, operand 1, single buffered']
    #allocation10 [shape = 's32[1]{0}', space=sflag, size = 0x4, scoped, tag = 'scoped memory for tpu_custom_call.1']
    #allocation11 [shape = 'u8[65536]{0}', space=vmem, size = 0x10000, scoped, tag = 'input window, operand 2, single buffered']
    #allocation12 [shape = 'u8[65536]{0}', space=vmem, size = 0x10000, scoped, tag = 'input window, operand 3, single buffered']
    #allocation13 [shape = 's32[1]{0}', space=sflag, size = 0x4, scoped, tag = 'scoped memory for tpu_custom_call.1']
    #allocation14 [shape = 'u8[65536]{0}', space=vmem, size = 0x10000, scoped, tag = 'input window, operand 4, single buffered']
    #allocation15 [shape = 'u8[8192]{0}', space=vmem, size = 0x2000, scoped, tag = 'output window, operand 0, single buffered']
    %13 = vsyncpa [#allocation7], 0
    %14 = vsyncpa [#allocation10], 0
    %15 = vsyncpa [#allocation13], 0
    %16 = vsyncpa [#allocation8], 0
    // Predicated region
    $region2: #{tpu_custom_call.1} parent=1 // pred_check
      _
    $region3: #{tpu_custom_call.1} parent=1 // pred_check_branch
      %18 = sbr.rel (0) target = $region5
    $region4: #{tpu_custom_call.1} parent=1 // pred_region
      %20 = vsyncadd [#allocation7], 0
      %s21 = sshll.u32 %s0, 4
      %s22 = int_to_ptr.hbm [resolvable:$true] %s21
      %s23 = sshll.u32 [#allocation6], 4
      %s24 = int_to_ptr.vmem [resolvable:$true] %s23
      %29 = dma.hbm_to_vmem [thread:$0]  %s22, 256, %s24, [#allocation7], 128, 128, 8
    $region5: #{tpu_custom_call.1} parent=1 // pred_fallthru
      _
    // Predicated region
    $region6: #{tpu_custom_call.1} parent=1 // pred_check
      _
    $region7: #{tpu_custom_call.1} parent=1 // pred_check_branch
      %31 = sbr.rel (0) target = $region9
    $region8: #{tpu_custom_call.1} parent=1 // pred_region
      %33 = vsyncadd [#allocation10], 0
      %s34 = sshll.u32 %s1, 4
      %s35 = int_to_ptr.hbm [resolvable:$true] %s34
      %s36 = sshll.u32 [#allocation9], 4
      %s37 = int_to_ptr.vmem [resolvable:$true] %s36
      %42 = dma.hbm_to_vmem [thread:$0]  %s35, 256, %s37, [#allocation10], 128, 128, 8
    $region9: #{tpu_custom_call.1} parent=1 // pred_fallthru
      _
    // Predicated region
    $region10: #{tpu_custom_call.1} parent=1 // pred_check
      _
    $region11: #{tpu_custom_call.1} parent=1 // pred_check_branch
      %44 = sbr.rel (0) target = $region13
    $region12: #{tpu_custom_call.1} parent=1 // pred_region
      %46 = vsyncadd [#allocation10], 0
      %s47 = sshll.u32 %s2, 4
      %s48 = int_to_ptr.hbm [resolvable:$true] %s47
      %s49 = sshll.u32 [#allocation11], 4
      %s50 = int_to_ptr.vmem [resolvable:$true] %s49
      %55 = dma.hbm_to_vmem [thread:$0]  %s48, 2048, %s50, [#allocation10], 128, 128, 8
    $region13: #{tpu_custom_call.1} parent=1 // pred_fallthru
      _
    // Predicated region
    $region14: #{tpu_custom_call.1} parent=1 // pred_check
      _
    $region15: #{tpu_custom_call.1} parent=1 // pred_check_branch
      %57 = sbr.rel (0) target = $region17
    $region16: #{tpu_custom_call.1} parent=1 // pred_region
      %59 = vsyncadd [#allocation13], 0
      %s60 = sshll.u32 %s3, 4
      %s61 = int_to_ptr.hbm [resolvable:$true] %s60
      %s62 = sshll.u32 [#allocation12], 4
      %s63 = int_to_ptr.vmem [resolvable:$true] %s62
      %68 = dma.hbm_to_vmem [thread:$0]  %s61, 2048, %s63, [#allocation13], 128, 128, 8
    $region17: #{tpu_custom_call.1} parent=1 // pred_fallthru
      _
    // Predicated region
    $region18: #{tpu_custom_call.1} parent=1 // pred_check
      _
    $region19: #{tpu_custom_call.1} parent=1 // pred_check_branch
      %70 = sbr.rel (0) target = $region21
    $region20: #{tpu_custom_call.1} parent=1 // pred_region
      %72 = vsyncadd [#allocation13], 0
      %s73 = sshll.u32 %s4, 4
      %s74 = int_to_ptr.hbm [resolvable:$true] %s73
      %s75 = sshll.u32 [#allocation14], 4
      %s76 = int_to_ptr.vmem [resolvable:$true] %s75
      %81 = dma.hbm_to_vmem [thread:$0]  %s74, 2048, %s76, [#allocation13], 128, 128, 8
    $region21: #{tpu_custom_call.1} parent=1 // pred_fallthru
      _
    // Predicated region
    $region22: #{tpu_custom_call.1} parent=1 // pred_check
      _
    $region23: #{tpu_custom_call.1} parent=1 // pred_check_branch
      %83 = sbr.rel (0) target = $region25
    $region24: #{tpu_custom_call.1} parent=1 // pred_region
      _
    $region25: #{tpu_custom_call.1} parent=1 // pred_fallthru
      _
    // Predicated region
    $region26: #{tpu_custom_call.1} parent=1 // pred_check
      _
    $region27: #{tpu_custom_call.1} parent=1 // pred_check_branch
      %85 = sbr.rel (0) target = $region29
    $region28: #{tpu_custom_call.1} parent=1 // pred_region
      _
    $region29: #{tpu_custom_call.1} parent=1 // pred_fallthru
      _
    // Predicated region
    $region30: #{tpu_custom_call.1} parent=1 // pred_check
      _
    $region31: #{tpu_custom_call.1} parent=1 // pred_check_branch
      %87 = sbr.rel (0) target = $region33
    $region32: #{tpu_custom_call.1} parent=1 // pred_region
      _
    $region33: #{tpu_custom_call.1} parent=1 // pred_fallthru
      _
    // Predicated region
    $region34: #{tpu_custom_call.1} parent=1 // pred_check
      _
    $region35: #{tpu_custom_call.1} parent=1 // pred_check_branch
      %89 = sbr.rel (0) target = $region37
    $region36: #{tpu_custom_call.1} parent=1 // pred_region
      %91 = dma.done [#allocation7], 256
    $region37: #{tpu_custom_call.1} parent=1 // pred_fallthru
      _
    // Predicated region
    $region38: #{tpu_custom_call.1} parent=1 // pred_check
      _
    $region39: #{tpu_custom_call.1} parent=1 // pred_check_branch
      %93 = sbr.rel (0) target = $region41
    $region40: #{tpu_custom_call.1} parent=1 // pred_region
      %95 = dma.done [#allocation10], 256
    $region41: #{tpu_custom_call.1} parent=1 // pred_fallthru
      _
    // Predicated region
    $region42: #{tpu_custom_call.1} parent=1 // pred_check
      _
    $region43: #{tpu_custom_call.1} parent=1 // pred_check_branch
      %97 = sbr.rel (0) target = $region45
    $region44: #{tpu_custom_call.1} parent=1 // pred_region
      %99 = dma.done [#allocation10], 2048
    $region45: #{tpu_custom_call.1} parent=1 // pred_fallthru
      _
    // Predicated region
    $region46: #{tpu_custom_call.1} parent=1 // pred_check
      _
    $region47: #{tpu_custom_call.1} parent=1 // pred_check_branch
      %101 = sbr.rel (0) target = $region49
    $region48: #{tpu_custom_call.1} parent=1 // pred_region
      %103 = dma.done [#allocation13], 2048
    $region49: #{tpu_custom_call.1} parent=1 // pred_fallthru
      _
    // Predicated region
    $region50: #{tpu_custom_call.1} parent=1 // pred_check
      _
    $region51: #{tpu_custom_call.1} parent=1 // pred_check_branch
      %105 = sbr.rel (0) target = $region53
    $region52: #{tpu_custom_call.1} parent=1 // pred_region
      %107 = dma.done [#allocation13], 2048
    $region53: #{tpu_custom_call.1} parent=1 // pred_fallthru
      _
    %p108 = scmp.eq.s32.totalorder 0, 0
    // Predicated region
    $region54: #{tpu_custom_call.1} parent=1 // pred_check
      %p109 = pneg %p108
    $region55: #{tpu_custom_call.1} parent=1 // pred_check_branch
      %111 = sbr.rel (%p109) target = $region57
    $region56: #{tpu_custom_call.1} parent=1 // pred_region
      %v112 = vld [vmem:[#allocation6] sm:$0xff]
      %v113 = vld [vmem:[#allocation6 + $0x8] sm:$0xff]
      %v114 = vld [vmem:[#allocation11] sm:$0xff]
      %v115 = vld [vmem:[#allocation11 + $0x8] sm:$0xff]
      %v116 = vld [vmem:[#allocation11 + $0x10] sm:$0xff]
      %v117 = vld [vmem:[#allocation11 + $0x18] sm:$0xff]
      %v118 = vld [vmem:[#allocation11 + $0x20] sm:$0xff]
      %v119 = vld [vmem:[#allocation11 + $0x28] sm:$0xff]
      %v120 = vld [vmem:[#allocation11 + $0x30] sm:$0xff]
      %v121 = vld [vmem:[#allocation11 + $0x38] sm:$0xff]
      %v122 = vld [vmem:[#allocation11 + $0x40] sm:$0xff]
      %v123 = vld [vmem:[#allocation11 + $0x48] sm:$0xff]
      %v124 = vld [vmem:[#allocation11 + $0x50] sm:$0xff]
      %v125 = vld [vmem:[#allocation11 + $0x58] sm:$0xff]
      %v126 = vld [vmem:[#allocation11 + $0x60] sm:$0xff]
      %v127 = vld [vmem:[#allocation11 + $0x68] sm:$0xff]
      %v128 = vld [vmem:[#allocation11 + $0x70] sm:$0xff]
      %v129 = vld [vmem:[#allocation11 + $0x78] sm:$0xff]
      %v130 = vld [vmem:[%s5] sm:$0x1]
      %v132 = vperm.slane %v130, 0
      %134 = vmatpush.msra.mxu0 %v129
      %135 = vmatpush.msra.mxu0 %v128
      %136 = vmatpush.msra.mxu0 %v127
      %137 = vmatpush.msra.mxu0 %v126
      %138 = vmatpush.msra.mxu0 %v125
      %139 = vmatpush.msra.mxu0 %v124
      %140 = vmatpush.msra.mxu0 %v123
      %141 = vmatpush.msra.mxu0 %v122
      %142 = vmatpush.msra.mxu0 %v121
      %143 = vmatpush.msra.mxu0 %v120
      %144 = vmatpush.msra.mxu0 %v119
      %145 = vmatpush.msra.mxu0 %v118
      %146 = vmatpush.msra.mxu0 %v117
      %147 = vmatpush.msra.mxu0 %v116
      %148 = vmatpush.msra.mxu0 %v115
      %149 = vmatpush.msra.mxu0 %v114
      %150 = vmatmul.f32.gmra.mxu0 %v112
      %v151 = vpop.f32.mrf.mxu0
      %v152 = vadd.f32 %v132, %v151
      %153 = vmatmul.f32.gmra.mxu0 %v113
      %v154 = vpop.f32.mrf.mxu0
      %v155 = vadd.f32 %v132, %v154
      %156 = vdwg.mxu0
      %157 = vst [vmem:[#allocation2] sm:$0xff] %v152
      %158 = vst [vmem:[#allocation2 + $0x8] sm:$0xff] %v155
      %vm159 = vcmask 7168
      %160 = vst.msk [vmem:[#allocation3] sm:$0xff] %vm159, -inf
      %161 = vst.msk [vmem:[#allocation3 + $0x8] sm:$0xff] %vm159, -inf
      %162 = vst.msk [vmem:[#allocation4] sm:$0xff] %vm159, 0.0
      %163 = vst.msk [vmem:[#allocation4 + $0x8] sm:$0xff] %vm159, 0.0
      %164 = vst [vmem:[#allocation5] sm:$0xff] 0.0
      %165 = vst [vmem:[#allocation5 + $0x8] sm:$0xff] 0.0
    $region57: #{tpu_custom_call.1} parent=1 // pred_fallthru
      _
    %v166 = vld [vmem:[#allocation9] sm:$0xff]
    %v167 = vld [vmem:[#allocation9 + $0x8] sm:$0xff]
    %v168 = vld [vmem:[#allocation12] sm:$0xff]
    %v169 = vld [vmem:[#allocation12 + $0x8] sm:$0xff]
    %v170 = vld [vmem:[#allocation12 + $0x10] sm:$0xff]
    %v171 = vld [vmem:[#allocation12 + $0x18] sm:$0xff]
    %v172 = vld [vmem:[#allocation12 + $0x20] sm:$0xff]
    %v173 = vld [vmem:[#allocation12 + $0x28] sm:$0xff]
    %v174 = vld [vmem:[#allocation12 + $0x30] sm:$0xff]
    %v175 = vld [vmem:[#allocation12 + $0x38] sm:$0xff]
    %v176 = vld [vmem:[#allocation12 + $0x40] sm:$0xff]
    %v177 = vld [vmem:[#allocation12 + $0x48] sm:$0xff]
    %v178 = vld [vmem:[#allocation12 + $0x50] sm:$0xff]
    %v179 = vld [vmem:[#allocation12 + $0x58] sm:$0xff]
    %v180 = vld [vmem:[#allocation12 + $0x60] sm:$0xff]
    %v181 = vld [vmem:[#allocation12 + $0x68] sm:$0xff]
    %v182 = vld [vmem:[#allocation12 + $0x70] sm:$0xff]
    %v183 = vld [vmem:[#allocation12 + $0x78] sm:$0xff]
    %v184 = vld [vmem:[%s6] sm:$0x1]
    %v186 = vperm.slane %v184, 0
    %188 = vmatpush.msra.mxu0 %v183
    %189 = vmatpush.msra.mxu0 %v182
    %190 = vmatpush.msra.mxu0 %v181
    %191 = vmatpush.msra.mxu0 %v180
    %192 = vmatpush.msra.mxu0 %v179
    %193 = vmatpush.msra.mxu0 %v178
    %194 = vmatpush.msra.mxu0 %v177
    %195 = vmatpush.msra.mxu0 %v176
    %196 = vmatpush.msra.mxu0 %v175
    %197 = vmatpush.msra.mxu0 %v174
    %198 = vmatpush.msra.mxu0 %v173
    %199 = vmatpush.msra.mxu0 %v172
    %200 = vmatpush.msra.mxu0 %v171
    %201 = vmatpush.msra.mxu0 %v170
    %202 = vmatpush.msra.mxu0 %v169
    %203 = vmatpush.msra.mxu0 %v168
    %204 = vmatmul.f32.gmra.mxu0 %v166
    %v205 = vpop.f32.mrf.mxu0
    %v206 = vadd.f32 %v186, %v205
    %207 = vmatmul.f32.gmra.mxu0 %v167
    %v208 = vpop.f32.mrf.mxu0
    %v209 = vadd.f32 %v186, %v208
    %210 = vdwg.mxu0
    %v211 = vld [vmem:[#allocation14] sm:$0xff]
    %v212 = vld [vmem:[#allocation14 + $0x8] sm:$0xff]
    %v213 = vld [vmem:[#allocation14 + $0x10] sm:$0xff]
    %v214 = vld [vmem:[#allocation14 + $0x18] sm:$0xff]
    %v215 = vld [vmem:[#allocation14 + $0x20] sm:$0xff]
    %v216 = vld [vmem:[#allocation14 + $0x28] sm:$0xff]
    %v217 = vld [vmem:[#allocation14 + $0x30] sm:$0xff]
    %v218 = vld [vmem:[#allocation14 + $0x38] sm:$0xff]
    %v219 = vld [vmem:[#allocation14 + $0x40] sm:$0xff]
    %v220 = vld [vmem:[#allocation14 + $0x48] sm:$0xff]
    %v221 = vld [vmem:[#allocation14 + $0x50] sm:$0xff]
    %v222 = vld [vmem:[#allocation14 + $0x58] sm:$0xff]
    %v223 = vld [vmem:[#allocation14 + $0x60] sm:$0xff]
    %v224 = vld [vmem:[#allocation14 + $0x68] sm:$0xff]
    %v225 = vld [vmem:[#allocation14 + $0x70] sm:$0xff]
    %v226 = vld [vmem:[#allocation14 + $0x78] sm:$0xff]
    %v227 = vld [vmem:[%s7] sm:$0x1]
    %v229 = vperm.slane %v227, 0
    %231 = vmatpush.msra.mxu0 %v226
    %232 = vmatpush.msra.mxu0 %v225
    %233 = vmatpush.msra.mxu0 %v224
    %234 = vmatpush.msra.mxu0 %v223
    %235 = vmatpush.msra.mxu0 %v222
    %236 = vmatpush.msra.mxu0 %v221
    %237 = vmatpush.msra.mxu0 %v220
    %238 = vmatpush.msra.mxu0 %v219
    %239 = vmatpush.msra.mxu0 %v218
    %240 = vmatpush.msra.mxu0 %v217
    %241 = vmatpush.msra.mxu0 %v216
    %242 = vmatpush.msra.mxu0 %v215
    %243 = vmatpush.msra.mxu0 %v214
    %244 = vmatpush.msra.mxu0 %v213
    %245 = vmatpush.msra.mxu0 %v212
    %246 = vmatpush.msra.mxu0 %v211
    %247 = vmatmul.f32.gmra.mxu0 %v166
    %v248 = vpop.f32.mrf.mxu0
    %v249 = vadd.f32 %v229, %v248
    %250 = vmatmul.f32.gmra.mxu0 %v167
    %v251 = vpop.f32.mrf.mxu0
    %v252 = vadd.f32 %v229, %v251
    %253 = vdwg.mxu0
    %v254 = vld [vmem:[#allocation2] sm:$0xff]
    %v255 = vld [vmem:[#allocation2 + $0x8] sm:$0xff]
    %256 = vmatpush.xpose.msra.mxu0 0.0
    %257 = vmatpush.xpose.msra.mxu0 0.0
    %258 = vmatpush.xpose.msra.mxu0 0.0
    %259 = vmatpush.xpose.msra.mxu0 0.0
    %260 = vmatpush.xpose.msra.mxu0 0.0
    %261 = vmatpush.xpose.msra.mxu0 0.0
    %262 = vmatpush.xpose.msra.mxu0 0.0
    %263 = vmatpush.xpose.msra.mxu0 0.0
    %264 = vmatpush.xpose.msra.mxu0 0.0
    %265 = vmatpush.xpose.msra.mxu0 0.0
    %266 = vmatpush.xpose.msra.mxu0 0.0
    %267 = vmatpush.xpose.msra.mxu0 0.0
    %268 = vmatpush.xpose.msra.mxu0 0.0
    %269 = vmatpush.xpose.msra.mxu0 0.0
    %270 = vmatpush.xpose.msra.mxu0 0.0
    %271 = vmatpush.xpose.msra.mxu0 %v206
    %272 = vmatmul.f32.gmra.mxu0 %v254
    %v273 = vpop.f32.mrf.mxu0
    %v274 = vadd.f32 0.0, %v273
    %275 = vdwg.mxu0
    %276 = vmatpush.xpose.msra.mxu0 0.0
    %277 = vmatpush.xpose.msra.mxu0 0.0
    %278 = vmatpush.xpose.msra.mxu0 0.0
    %279 = vmatpush.xpose.msra.mxu0 0.0
    %280 = vmatpush.xpose.msra.mxu0 0.0
    %281 = vmatpush.xpose.msra.mxu0 0.0
    %282 = vmatpush.xpose.msra.mxu0 0.0
    %283 = vmatpush.xpose.msra.mxu0 0.0
    %284 = vmatpush.xpose.msra.mxu0 0.0
    %285 = vmatpush.xpose.msra.mxu0 0.0
    %286 = vmatpush.xpose.msra.mxu0 0.0
    %287 = vmatpush.xpose.msra.mxu0 0.0
    %288 = vmatpush.xpose.msra.mxu0 0.0
    %289 = vmatpush.xpose.msra.mxu0 0.0
    %290 = vmatpush.xpose.msra.mxu0 0.0
    %291 = vmatpush.xpose.msra.mxu0 %v209
    %292 = vmatmul.f32.gmra.mxu0 %v255
    %v293 = vpop.f32.mrf.mxu0
    %v294 = vadd.f32 0.0, %v293
    %295 = vdwg.mxu0
    %v296 = vld [vmem:[#allocation3] sm:$0xff]
    %v297 = vld [vmem:[#allocation3 + $0x8] sm:$0xff]
    %vm298 = vcmask 64512
    %v299 = vsel %vm298, %v274, -inf
    %300 = vmax.xlane.f32.xlu0 %v299
    %v301 = vpop.xlane.xlu0 %300
    %v302 = vsel %vm298, %v294, -inf
    %303 = vmax.xlane.f32.xlu0 %v302
    %v304 = vpop.xlane.xlu0 %303
    %v305 = vmax.f32 %v296, %v301
    %v306 = vmax.f32 %v297, %v304
    %v307 = vsub.f32 %v296, %v305
    %v308 = vsub.f32 %v297, %v306
    %v309 = vmul.f32 %v307, 1.442695
    %v310 = vpow.pop %v309
    %v311 = vmul.f32 %v308, 1.442695
    %v312 = vpow.pop %v311
    %314 = vset.pattern.permute.xlu0 0
    %315 = vperm.xlu0 %314, %v305
    %v316 = vpop.permute.xlu0 %315
    %319 = vset.pattern.permute.xlu0 0
    %320 = vperm.xlu0 %319, %v306
    %v321 = vpop.permute.xlu0 %320
    %v323 = vsub.f32 %v274, %v316
    %v324 = vsub.f32 %v294, %v321
    %v325 = vmul.f32 %v323, 1.442695
    %v326 = vpow.pop %v325
    %v327 = vmul.f32 %v324, 1.442695
    %v328 = vpow.pop %v327
    %v329 = vld [vmem:[#allocation4] sm:$0xff]
    %v330 = vld [vmem:[#allocation4 + $0x8] sm:$0xff]
    %v331 = vmul.f32 %v310, %v329
    %v332 = vmul.f32 %v312, %v330
    %v333 = vsel %vm298, %v326, 0.0
    %334 = vadd.xlane.f32.xlu0 %v333
    %v335 = vpop.xlane.xlu0 %334
    %v336 = vsel %vm298, %v328, 0.0
    %337 = vadd.xlane.f32.xlu0 %v336
    %v338 = vpop.xlane.xlu0 %337
    %v339 = vadd.f32 %v331, %v335
    %v340 = vadd.f32 %v332, %v338
    %vm341 = vcmask 7168
    %342 = vst.msk [vmem:[#allocation4] sm:$0xff] %vm341, %v339
    %343 = vst.msk [vmem:[#allocation4 + $0x8] sm:$0xff] %vm341, %v340
    %v344 = vld [vmem:[#allocation5] sm:$0xff]
    %v345 = vld [vmem:[#allocation5 + $0x8] sm:$0xff]
    %347 = vset.pattern.permute.xlu0 0
    %348 = vperm.xlu0 %347, %v310
    %v349 = vpop.permute.xlu0 %348
    %352 = vset.pattern.permute.xlu0 0
    %353 = vperm.xlu0 %352, %v312
    %v354 = vpop.permute.xlu0 %353
    %v356 = vmul.f32 %v349, %v344
    %v357 = vmul.f32 %v354, %v345
    %v359 = vsel %vm298, %v326, 0
    %361 = vmatpush.msra.mxu0 0.0
    %362 = vmatpush.msra.mxu0 0.0
    %363 = vmatpush.msra.mxu0 0.0
    %364 = vmatpush.msra.mxu0 0.0
    %365 = vmatpush.msra.mxu0 0.0
    %366 = vmatpush.msra.mxu0 0.0
    %367 = vmatpush.msra.mxu0 0.0
    %368 = vmatpush.msra.mxu0 0.0
    %369 = vmatpush.msra.mxu0 0.0
    %370 = vmatpush.msra.mxu0 0.0
    %371 = vmatpush.msra.mxu0 0.0
    %372 = vmatpush.msra.mxu0 0.0
    %373 = vmatpush.msra.mxu0 0.0
    %374 = vmatpush.msra.mxu0 0.0
    %375 = vmatpush.msra.mxu0 0.0
    %376 = vmatpush.msra.mxu0 %v249
    %377 = vmatmul.f32.gmra.mxu0 %v359
    %v378 = vpop.f32.mrf.mxu0
    %v379 = vadd.f32 0.0, %v378
    %380 = vdwg.mxu0
    %v382 = vsel %vm298, %v328, 0
    %384 = vmatpush.msra.mxu0 0.0
    %385 = vmatpush.msra.mxu0 0.0
    %386 = vmatpush.msra.mxu0 0.0
    %387 = vmatpush.msra.mxu0 0.0
    %388 = vmatpush.msra.mxu0 0.0
    %389 = vmatpush.msra.mxu0 0.0
    %390 = vmatpush.msra.mxu0 0.0
    %391 = vmatpush.msra.mxu0 0.0
    %392 = vmatpush.msra.mxu0 0.0
    %393 = vmatpush.msra.mxu0 0.0
    %394 = vmatpush.msra.mxu0 0.0
    %395 = vmatpush.msra.mxu0 0.0
    %396 = vmatpush.msra.mxu0 0.0
    %397 = vmatpush.msra.mxu0 0.0
    %398 = vmatpush.msra.mxu0 0.0
    %399 = vmatpush.msra.mxu0 %v252
    %400 = vmatmul.f32.gmra.mxu0 %v382
    %v401 = vpop.f32.mrf.mxu0
    %v402 = vadd.f32 0.0, %v401
    %403 = vdwg.mxu0
    %v404 = vadd.f32 %v356, %v379
    %v405 = vadd.f32 %v357, %v402
    %406 = vst [vmem:[#allocation5] sm:$0xff] %v404
    %407 = vst [vmem:[#allocation5 + $0x8] sm:$0xff] %v405
    %408 = vst.msk [vmem:[#allocation3] sm:$0xff] %vm341, %v305
    %409 = vst.msk [vmem:[#allocation3 + $0x8] sm:$0xff] %vm341, %v306
    // Predicated region
    $region58: #{tpu_custom_call.1} parent=1 // pred_check
      %p410 = pneg %p108
    $region59: #{tpu_custom_call.1} parent=1 // pred_check_branch
      %412 = sbr.rel (%p410) target = $region61
    $region60: #{tpu_custom_call.1} parent=1 // pred_region
      %v413 = vld [vmem:[#allocation4] sm:$0xff]
      %v414 = vld [vmem:[#allocation4 + $0x8] sm:$0xff]
      %v415 = vrcp.pop %v413
      %v416 = vmul.f32 %v413, %v415
      %v417 = vsub.f32 1.0, %v416
      %v418 = vmul.f32 %v415, %v417
      %v419 = vadd.f32 %v415, %v418
      %vm420 = vweird.f32 %v413
      %vm421 = vweird.f32 %v415
      %vm422 = vmor %vm420, %vm421
      %v423 = vsel %vm422, %v415, %v419
      %v424 = vand.u32 2147483647, %v413
      %vm425 = vcmp.eq.f32.partialorder %v424, 8.507059e+37
      %v426 = vand.u32 %v413, 2147483648
      %v427 = vor.u32 1.1754944e-38, %v426
      %v428 = vsel %vm425, %v427, %v423
      %v429 = vrcp.pop %v414
      %v430 = vmul.f32 %v414, %v429
      %v431 = vsub.f32 1.0, %v430
      %v432 = vmul.f32 %v429, %v431
      %v433 = vadd.f32 %v429, %v432
      %vm434 = vweird.f32 %v414
      %vm435 = vweird.f32 %v429
      %vm436 = vmor %vm434, %vm435
      %v437 = vsel %vm436, %v429, %v433
      %v438 = vand.u32 2147483647, %v414
      %vm439 = vcmp.eq.f32.partialorder %v438, 8.507059e+37
      %v440 = vand.u32 %v414, 2147483648
      %v441 = vor.u32 1.1754944e-38, %v440
      %v442 = vsel %vm439, %v441, %v437
      %v443 = vld [vmem:[#allocation5] sm:$0xff]
      %v444 = vld [vmem:[#allocation5 + $0x8] sm:$0xff]
      %446 = vset.pattern.permute.xlu0 0
      %447 = vperm.xlu0 %446, %v428
      %v448 = vpop.permute.xlu0 %447
      %451 = vset.pattern.permute.xlu0 0
      %452 = vperm.xlu0 %451, %v442
      %v453 = vpop.permute.xlu0 %452
      %v455 = vmul.f32 %v443, %v448
      %v456 = vmul.f32 %v444, %v453
      %457 = vst [vmem:[#allocation15] sm:$0xff] %v455
      %458 = vst [vmem:[#allocation15 + $0x8] sm:$0xff] %v456
    $region61: #{tpu_custom_call.1} parent=1 // pred_fallthru
      _
    // Predicated region
    $region62: #{tpu_custom_call.1} parent=1 // pred_check
      _
    $region63: #{tpu_custom_call.1} parent=1 // pred_check_branch
      %460 = sbr.rel (0) target = $region65
    $region64: #{tpu_custom_call.1} parent=1 // pred_region
      %462 = vsyncadd [#allocation8], 0
      %s463 = sshll.u32 [#allocation15], 4
      %s464 = int_to_ptr.vmem [resolvable:$true] %s463
      %s465 = sshll.u32 %s8, 4
      %s466 = int_to_ptr.hbm [resolvable:$true] %s465
      %471 = dma.vmem_to_hbm [thread:$0]  %s464, 256, %s466, [#allocation8], 128, 128, 8
    $region65: #{tpu_custom_call.1} parent=1 // pred_fallthru
      _
    // Predicated region
    $region66: #{tpu_custom_call.1} parent=1 // pred_check
      _
    $region67: #{tpu_custom_call.1} parent=1 // pred_check_branch
      %473 = sbr.rel (0) target = $region69
    $region68: #{tpu_custom_call.1} parent=1 // pred_region
      %475 = dma.done [#allocation8], 256
    $region69: #{tpu_custom_call.1} parent=1 // pred_fallthru
      _
    %476 = vsyncpa [#allocation7], 1
    %477 = vsyncpa [#allocation10], 1
    %478 = vsyncpa [#allocation13], 1
    %479 = vsyncpa [#allocation8], 1

</llo_original>
